<compile_context>
chip_gen: v6e
topology: v6e:2x2x1
jax: 0.10.0
libtpu: 0.0.40
codegen_flags: <defaults>
</compile_context>

<pallas_src>
import jax
import jax.numpy as jnp
from jax.experimental import pallas as pl
from jax.experimental.pallas import tpu as pltpu

_LANE_CANDIDATES = (8192, 4096, 2048, 1024, 512, 256, 128)
_TWO_CORE_MIN_BYTES = 2 * 1024 * 1024  # above this, force >=2 blocks (v7x megacore)


def _detect_vmem_capacity_bytes() -> int:
    try:
        return int(pltpu.get_tpu_info().vmem_capacity_bytes)
    except Exception:
        return 64 * 1024 * 1024  # conservative fallback: assume v7x (64 MiB / TC)


_VMEM_CAP_BYTES = _detect_vmem_capacity_bytes()
# v5e/v6e (128 MiB VMEM, HBM-bound): 8 MiB blocks.  v7x (64 MiB, VALU-bound): 4 MiB.
_TARGET_BLOCK_BYTES = (8 if _VMEM_CAP_BYTES >= 96 * 1024 * 1024 else 4) * 1024 * 1024


# ---------------- hand-rolled f32 cos (VPU polynomial) ----------------------
# Cody-Waite range reduction + Cephes sinf/cosf minimax polynomials.
# Accurate to a couple of f32 ulp for |x| up to ~1e4 (any sane activation
# range); deliberately skips the expensive huge-argument reduction that XLA's
# generic cos expansion carries.
_TWO_OVER_PI = 0.6366197723675814
_PIO2_HI = 1.5703125                  # exact 11-bit head of pi/2
_PIO2_MID = 4.837512969970703125e-4   # exact next bits
_PIO2_LO = 7.549789948768648e-8       # remainder


def _cos_f32(x):
    n_f = jnp.floor(x * _TWO_OVER_PI + 0.5)       # nearest multiple of pi/2
    q = n_f.astype(jnp.int32) & 3                 # quadrant; & 3 is mod-4-safe for negatives
    r = x - n_f * _PIO2_HI
    r = r - n_f * _PIO2_MID
    r = r - n_f * _PIO2_LO                        # r in ~[-pi/4, pi/4]
    r2 = r * r
    cos_r = 1.0 + r2 * (-0.5 + r2 * (4.166664568298827e-2
                                     + r2 * (-1.388731625493765e-3
                                             + r2 * 2.443315711809948e-5)))
    sin_r = r + r * r2 * (-1.6666654611e-1
                          + r2 * (8.3321608736e-3
                                  + r2 * (-1.9515295891e-4)))
    poly = jnp.where((q & 1) == 0, cos_r, sin_r)
    return jnp.where((q == 1) | (q == 2), -poly, poly)


def _cosid_kernel(x_ref, o_ref):
    # Compute in f32 even for bf16 I/O; cast back on the way out.
    x = x_ref[...].astype(jnp.float32)
    o_ref[...] = (_cos_f32(x) - x).astype(o_ref.dtype)


def _pallas_cosid_2d(x2d: jax.Array) -> jax.Array:
    """Run the Cosid kernel on a lane-dense (rows, lane_w) slab."""
    rows, lane_w = x2d.shape
    dtype = x2d.dtype
    itemsize = jnp.dtype(dtype).itemsize
    sublane = max(8, 32 // itemsize)              # 8 for f32, 16 for bf16, 32 for 8-bit
    total_bytes = rows * lane_w * itemsize

    # Target block rows from the per-generation block-byte budget.
    target_rows = max(sublane,
                      (_TARGET_BLOCK_BYTES // (itemsize * lane_w)) // sublane * sublane)

    # Guarantee >=2 blocks for mid/large slabs so both v7x TCs get work.
    if total_bytes >= _TWO_CORE_MIN_BYTES:
        half_rows = max(sublane, pl.cdiv(pl.cdiv(rows, 2), sublane) * sublane)
        target_rows = min(target_rows, half_rows)

    if target_rows >= rows:
        block_rows = rows          # single block == full array extent (always legal)
    else:
        block_rows = target_rows   # sublane-multiple; trailing partial block is masked

    grid = (pl.cdiv(rows, block_rows),)
    block_bytes = block_rows * lane_w * itemsize

    # Right-size scoped VMEM: 1 input + 1 output, double-buffered, plus margin
    # for the in-kernel f32 upcast when I/O is sub-32-bit.  Leave headroom for
    # neighbouring ops (matters on v7x's 64 MiB VMEM).
    f32_temp_bytes = 2 * block_rows * lane_w * 4 if itemsize < 4 else 0
    vmem_limit = 4 * block_bytes + f32_temp_bytes + (4 << 20)
    vmem_limit = int(min(max(vmem_limit, 16 << 20), (_VMEM_CAP_BYTES * 3) // 4))

    n = rows * lane_w
    cost = pl.CostEstimate(
        flops=22 * n,                       # range reduction + polys + select + subtract
        transcendentals=0,                  # cos is a VPU polynomial, not an EUP op
        bytes_accessed=2 * n * itemsize,    # read + write
    )

    return pl.pallas_call(
        _cosid_kernel,
        out_shape=jax.ShapeDtypeStruct((rows, lane_w), dtype),
        grid_spec=pl.GridSpec(
            grid=grid,
            in_specs=[pl.BlockSpec((block_rows, lane_w), lambda i: (i, 0))],
            out_specs=pl.BlockSpec((block_rows, lane_w), lambda i: (i, 0)),
        ),
        compiler_params=pltpu.CompilerParams(
            dimension_semantics=("parallel",),
            vmem_limit_bytes=vmem_limit,
        ),
        cost_estimate=cost,
    )(x2d)


def _cosid_impl(z: jax.Array) -> jax.Array:
    orig_shape = z.shape
    n = z.size
    if n == 0:
        return z
    if not jnp.issubdtype(z.dtype, jnp.floating):
        raise TypeError(f"Cosid expects a floating-point input, got {z.dtype}")

    lane_w = next((c for c in _LANE_CANDIDATES if n % c == 0), None)
    if lane_w is not None:
        # Common case: whole tensor reshapes to a lane-dense slab; zero pad/slice passes.
        return _pallas_cosid_2d(z.reshape(-1, lane_w)).reshape(orig_shape)

    # Ragged case: kernel on the largest 128-aligned prefix, plain JAX on the
    # (<128-element) tail.  Avoids a full-array pad and a padded-slab slice.
    flat = z.reshape(-1)
    n_main = (n // 128) * 128
    if n_main == 0:
        return jnp.cos(z) - z               # tiny tensor: not worth a kernel launch
    lane_main = next(c for c in _LANE_CANDIDATES if n_main % c == 0)
    out_main = _pallas_cosid_2d(flat[:n_main].reshape(-1, lane_main)).reshape(-1)
    tail = flat[n_main:]
    out_tail = (jnp.cos(tail) - tail).astype(z.dtype)
    return jnp.concatenate([out_main, out_tail]).reshape(orig_shape)


# jit the wrapper so the reshape/concat plumbing around pallas_call fuses.
cosid = jax.jit(_cosid_impl)


if __name__ == "__main__":
    key = jax.random.PRNGKey(0)
    ks = jax.random.split(key, 4)

    def ref(x):
        return jnp.cos(x) - x

    # 1) NCHW activation tensor (divisible / lane-dense path).
    x1 = jax.random.normal(ks[0], (2, 4, 16, 16), dtype=jnp.float32)
    y1 = jax.block_until_ready(cosid(x1))
    assert y1.shape == x1.shape and y1.dtype == x1.dtype
    assert jnp.allclose(y1, ref(x1), atol=1e-5, rtol=1e-5)

    # 2) Wide-lane slab with fewer rows than a sublane multiple (full-extent block).
    x2 = jax.random.normal(ks[1], (4, 8192), dtype=jnp.float32)
    y2 = jax.block_until_ready(cosid(x2))
    assert jnp.allclose(y2, ref(x2), atol=1e-5, rtol=1e-5)

    # 3) Ragged size (prefix kernel + plain-JAX tail path).
    x3 = jax.random.normal(ks[2], (5, 67), dtype=jnp.float32)
    y3 = jax.block_until_ready(cosid(x3))
    assert jnp.allclose(y3, ref(x3), atol=1e-5, rtol=1e-5)

    # 4) bf16 I/O (f32 math inside the kernel).
    x4 = jax.random.normal(ks[3], (8, 128, 32), dtype=jnp.bfloat16)
    y4 = jax.block_until_ready(cosid(x4))
    assert y4.dtype == jnp.bfloat16 and y4.shape == x4.shape
    assert jnp.allclose(y4.astype(jnp.float32), ref(x4.astype(jnp.float32)),
                        atol=5e-2, rtol=5e-2)

    print("KERNEL_OK")
</pallas_src>

<mosaic_0001>
module attributes {stable_mosaic.version = 11 : i64} {
  func.func @_cosid_kernel(%arg0: i32, %arg1: memref<1x2048xf32, #tpu.memory_space<vmem>>, %arg2: memref<1x2048xf32, #tpu.memory_space<vmem>>) attributes {dimension_semantics = [#tpu.dimension_semantics<parallel>], iteration_bounds = array<i64: 1>, scalar_prefetch = 0 : i64, scratch_operands = 0 : i64, tpu.core_type = #tpu.core_type<tc>, window_params = [{transform_indices = @transform_0, window_bounds = array<i64: 1, 2048>}, {transform_indices = @transform_1, window_bounds = array<i64: 1, 2048>}]} {
    %c0 = arith.constant 0 : index
    %c0_0 = arith.constant 0 : index
    %0 = vector.load %arg1[%c0, %c0_0] : memref<1x2048xf32, #tpu.memory_space<vmem>>, vector<1x2048xf32>
    %cst = arith.constant 0.636619746 : f32
    %1 = vector.broadcast %cst : f32 to vector<1x2048xf32>
    %2 = arith.mulf %0, %1 : vector<1x2048xf32>
    %cst_1 = arith.constant 5.000000e-01 : f32
    %3 = vector.broadcast %cst_1 : f32 to vector<1x2048xf32>
    %4 = arith.addf %2, %3 : vector<1x2048xf32>
    %5 = math.floor %4 : vector<1x2048xf32>
    %6 = arith.fptosi %5 : vector<1x2048xf32> to vector<1x2048xi32>
    %c3_i32 = arith.constant 3 : i32
    %7 = vector.broadcast %c3_i32 : i32 to vector<1x2048xi32>
    %8 = arith.andi %6, %7 : vector<1x2048xi32>
    %cst_2 = arith.constant 1.5703125 : f32
    %9 = vector.broadcast %cst_2 : f32 to vector<1x2048xf32>
    %10 = arith.mulf %5, %9 : vector<1x2048xf32>
    %11 = arith.subf %0, %10 : vector<1x2048xf32>
    %cst_3 = arith.constant 4.83751297E-4 : f32
    %12 = vector.broadcast %cst_3 : f32 to vector<1x2048xf32>
    %13 = arith.mulf %5, %12 : vector<1x2048xf32>
    %14 = arith.subf %11, %13 : vector<1x2048xf32>
    %cst_4 = arith.constant 7.549790e-08 : f32
    %15 = vector.broadcast %cst_4 : f32 to vector<1x2048xf32>
    %16 = arith.mulf %5, %15 : vector<1x2048xf32>
    %17 = arith.subf %14, %16 : vector<1x2048xf32>
    %18 = arith.mulf %17, %17 : vector<1x2048xf32>
    %cst_5 = arith.constant 2.44331568E-5 : f32
    %19 = vector.broadcast %cst_5 : f32 to vector<1x2048xf32>
    %20 = arith.mulf %18, %19 : vector<1x2048xf32>
    %cst_6 = arith.constant -0.00138873165 : f32
    %21 = vector.broadcast %cst_6 : f32 to vector<1x2048xf32>
    %22 = arith.addf %21, %20 : vector<1x2048xf32>
    %23 = arith.mulf %18, %22 : vector<1x2048xf32>
    %cst_7 = arith.constant 0.0416666456 : f32
    %24 = vector.broadcast %cst_7 : f32 to vector<1x2048xf32>
    %25 = arith.addf %24, %23 : vector<1x2048xf32>
    %26 = arith.mulf %18, %25 : vector<1x2048xf32>
    %cst_8 = arith.constant -5.000000e-01 : f32
    %27 = vector.broadcast %cst_8 : f32 to vector<1x2048xf32>
    %28 = arith.addf %27, %26 : vector<1x2048xf32>
    %29 = arith.mulf %18, %28 : vector<1x2048xf32>
    %cst_9 = arith.constant 1.000000e+00 : f32
    %30 = vector.broadcast %cst_9 : f32 to vector<1x2048xf32>
    %31 = arith.addf %30, %29 : vector<1x2048xf32>
    %32 = arith.mulf %17, %18 : vector<1x2048xf32>
    %cst_10 = arith.constant -1.95152956E-4 : f32
    %33 = vector.broadcast %cst_10 : f32 to vector<1x2048xf32>
    %34 = arith.mulf %18, %33 : vector<1x2048xf32>
    %cst_11 = arith.constant 0.00833216123 : f32
    %35 = vector.broadcast %cst_11 : f32 to vector<1x2048xf32>
    %36 = arith.addf %35, %34 : vector<1x2048xf32>
    %37 = arith.mulf %18, %36 : vector<1x2048xf32>
    %cst_12 = arith.constant -0.166666552 : f32
    %38 = vector.broadcast %cst_12 : f32 to vector<1x2048xf32>
    %39 = arith.addf %38, %37 : vector<1x2048xf32>
    %40 = arith.mulf %32, %39 : vector<1x2048xf32>
    %41 = arith.addf %17, %40 : vector<1x2048xf32>
    %c1_i32 = arith.constant 1 : i32
    %42 = vector.broadcast %c1_i32 : i32 to vector<1x2048xi32>
    %43 = arith.andi %8, %42 : vector<1x2048xi32>
    %c0_i32 = arith.constant 0 : i32
    %44 = vector.broadcast %c0_i32 : i32 to vector<1x2048xi32>
    %45 = arith.cmpi eq, %43, %44 : vector<1x2048xi32>
    %46 = arith.select %45, %31, %41 : vector<1x2048xi1>, vector<1x2048xf32>
    %c1_i32_13 = arith.constant 1 : i32
    %47 = vector.broadcast %c1_i32_13 : i32 to vector<1x2048xi32>
    %48 = arith.cmpi eq, %8, %47 : vector<1x2048xi32>
    %c2_i32 = arith.constant 2 : i32
    %49 = vector.broadcast %c2_i32 : i32 to vector<1x2048xi32>
    %50 = arith.cmpi eq, %8, %49 : vector<1x2048xi32>
    %51 = arith.ori %48, %50 : vector<1x2048xi1>
    %cst_14 = arith.constant 0.000000e+00 : f32
    %52 = vector.broadcast %cst_14 : f32 to vector<1x2048xf32>
    %53 = arith.subf %52, %46 : vector<1x2048xf32>
    %54 = arith.select %51, %53, %46 : vector<1x2048xi1>, vector<1x2048xf32>
    %55 = arith.subf %54, %0 : vector<1x2048xf32>
    %c0_15 = arith.constant 0 : index
    %c0_16 = arith.constant 0 : index
    %56 = vector.load %arg2[%c0_15, %c0_16] : memref<1x2048xf32, #tpu.memory_space<vmem>>, vector<1x2048xf32>
    tpu.vector_store %arg2[%c0_15, %c0_16], %55 {strides = array<i32>} : memref<1x2048xf32, #tpu.memory_space<vmem>>, vector<1x2048xf32>,
    return
  }
  func.func @transform_0(%arg0: i32) -> (i32, i32) {
    %c0_i32 = arith.constant 0 : i32
    %c0_i32_0 = arith.constant 0 : i32
    return %arg0, %c0_i32 : i32, i32
  }
  func.func @transform_1(%arg0: i32) -> (i32, i32) {
    %c0_i32 = arith.constant 0 : i32
    %c0_i32_0 = arith.constant 0 : i32
    return %arg0, %c0_i32 : i32, i32
  }
}

</mosaic_0001>

<llo_original>
// kernel: _cosid_impl.1
$region0: #{_cosid_impl.1}
  #allocation0 [shape = 'u32[]', space=smem, size = 0x4, offset = 0x4, fixed_abs, tag = 'smem constant byte address 0x4 - core index']
  #allocation1 [shape = 'u32[144,128]{1,0:T(1,128)}', space=vmem, size = 0x12000, scoped, tag = 'internal scratch']
  %s0 = inlined_call_operand.vmem [shape: f32[1,2048], index: 0, kind: input, shape index: {}]
  %s1 = inlined_call_operand.vmem [shape: f32[1,2048], index: 1, kind: output, shape index: {}]
  %s2 = sld [smem:[#allocation0]]
  $region14: #{_cosid_impl.1} parent=0
    _
  %s4 = ssub.s32 1, %s2
  %s5 = scalar_select 0, %s4, %s2
  // Predicated region
  $region2: #{_cosid_impl.1} parent=0 // pred_check
    _
  $region3: #{_cosid_impl.1} parent=0 // pred_check_branch
    %7 = sbr.rel (0) target = $region5
  $region4: #{_cosid_impl.1} parent=0 // pred_region
    _
  $region5: #{_cosid_impl.1} parent=0 // pred_fallthru
    _
  %v8 = vld [vmem:[%s0] sm:$0xff]
  %v9 = vld [vmem:[%s0 + $0x8] sm:$0xff]
  %v10 = vmul.f32 %v8, 0.63661975
  %v11 = vmul.f32 %v9, 0.63661975
  %v12 = vadd.f32 %v10, 0.5
  %v13 = vadd.f32 %v11, 0.5
  %v14 = vfloor.f32 %v12
  %v15 = vfloor.f32 %v13
  %v16 = vcvt.f32.s32.to.zero.pseudo %v14
  %v17 = vcvt.f32.s32.to.zero.pseudo %v15
  %v18 = vand.u32 %v16, 3
  %v19 = vand.u32 %v17, 3
  %v20 = vmul.f32 %v14, 1.5703125
  %v21 = vmul.f32 %v15, 1.5703125
  %v22 = vsub.f32 %v8, %v20
  %v23 = vsub.f32 %v9, %v21
  %v24 = vmul.f32 %v14, 0.0004837513
  %v25 = vmul.f32 %v15, 0.0004837513
  %v26 = vsub.f32 %v22, %v24
  %v27 = vsub.f32 %v23, %v25
  %v28 = vmul.f32 %v14, 7.54979e-08
  %v29 = vmul.f32 %v15, 7.54979e-08
  %v30 = vsub.f32 %v26, %v28
  %v31 = vsub.f32 %v27, %v29
  %v32 = vmul.f32 %v30, %v30
  %v33 = vmul.f32 %v31, %v31
  %v34 = vmul.f32 %v32, 2.4433157e-05
  %v35 = vmul.f32 %v33, 2.4433157e-05
  %v36 = vadd.f32 %v34, -0.0013887316
  %v37 = vadd.f32 %v35, -0.0013887316
  %v38 = vmul.f32 %v32, %v36
  %v39 = vmul.f32 %v33, %v37
  %v40 = vadd.f32 %v38, 0.041666646
  %v41 = vadd.f32 %v39, 0.041666646
  %v42 = vmul.f32 %v32, %v40
  %v43 = vmul.f32 %v33, %v41
  %v44 = vadd.f32 %v42, -0.5
  %v45 = vadd.f32 %v43, -0.5
  %v46 = vmul.f32 %v32, %v44
  %v47 = vmul.f32 %v33, %v45
  %v48 = vadd.f32 %v46, 1.0
  %v49 = vadd.f32 %v47, 1.0
  %v50 = vmul.f32 %v30, %v32
  %v51 = vmul.f32 %v31, %v33
  %v52 = vmul.f32 %v32, -0.00019515296
  %v53 = vmul.f32 %v33, -0.00019515296
  %v54 = vadd.f32 %v52, 0.008332161
  %v55 = vadd.f32 %v53, 0.008332161
  %v56 = vmul.f32 %v32, %v54
  %v57 = vmul.f32 %v33, %v55
  %v58 = vadd.f32 %v56, -0.16666655
  %v59 = vadd.f32 %v57, -0.16666655
  %v60 = vmul.f32 %v50, %v58
  %v61 = vmul.f32 %v51, %v59
  %v62 = vadd.f32 %v30, %v60
  %v63 = vadd.f32 %v31, %v61
  %v64 = vand.u32 %v18, 1
  %v65 = vand.u32 %v19, 1
  %vm66 = vcmp.eq.s32.totalorder %v64, 0
  %vm67 = vcmp.eq.s32.totalorder %v65, 0
  %v68 = vsel %vm66, %v48, %v62
  %v69 = vsel %vm67, %v49, %v63
  %vm70 = vcmp.eq.s32.totalorder %v18, 1
  %vm71 = vcmp.eq.s32.totalorder %v19, 1
  %vm72 = vcmp.eq.s32.totalorder %v18, 2
  %vm73 = vcmp.eq.s32.totalorder %v19, 2
  %vm74 = vmor %vm70, %vm72
  %vm75 = vmor %vm71, %vm73
  %v76 = vsub.f32 0.0, %v68
  %v77 = vsub.f32 0.0, %v69
  %v78 = vsel %vm74, %v76, %v68
  %v79 = vsel %vm75, %v77, %v69
  %v80 = vsub.f32 %v78, %v8
  %v81 = vsub.f32 %v79, %v9
  %82 = vst [vmem:[%s1] sm:$0xff] %v80
  %83 = vst [vmem:[%s1 + $0x8] sm:$0xff] %v81
  // Predicated region
  $region6: #{_cosid_impl.1} parent=0 // pred_check
    _
  $region7: #{_cosid_impl.1} parent=0 // pred_check_branch
    %85 = sbr.rel (0) target = $region9
  $region8: #{_cosid_impl.1} parent=0 // pred_region
    _
  $region9: #{_cosid_impl.1} parent=0 // pred_fallthru
    _
  // Predicated region
  $region10: #{_cosid_impl.1} parent=0 // pred_check
    _
  $region11: #{_cosid_impl.1} parent=0 // pred_check_branch
    %87 = sbr.rel (0) target = $region13
  $region12: #{_cosid_impl.1} parent=0 // pred_region
    _
  $region13: #{_cosid_impl.1} parent=0 // pred_fallthru
    _

</llo_original>
